<compile_context>
chip_gen: v7x
topology: tpu7x:2x2x1
jax: 0.10.0
libtpu: 0.0.40
codegen_flags: <defaults>
</compile_context>

<pallas_src>
import numpy as np
import jax
import jax.numpy as jnp
from jax.experimental import pallas as pl
from jax.experimental.pallas import tpu as pltpu


def _round_up(x, m):
    return (x + m - 1) // m * m


def _build_mlp_kernel(layer_descs):
    """Kernel closure over the static layer structure.

    layer_descs is a tuple of per-layer descriptors (explicit flags):
      ("plain", w_idx, din, dout_padded)
      ("skip",  wh_idx, wz_idx, din_h, din_z, dout_padded)
    w_idx / wh_idx / wz_idx index the packed weight slab's leading axis.
    """

    def kernel(z_ref, w_ref, b_ref, out_ref):
        h = z_ref[...]                                   # (TM, z_dim_p) f32
        for li, d in enumerate(layer_descs):
            dout = d[-1]
            if d[0] == "plain":
                _, wi, din, _ = d
                h = jnp.dot(h.astype(w_ref.dtype), w_ref[wi, :din, :dout],
                            preferred_element_type=jnp.float32)
            else:
                _, whi, wzi, din_h, din_z, _ = d
                # Re-read z right before its use: the tile is already resident
                # in VMEM, so this is a cheap vld and it avoids pinning the
                # (TM, z_dim_p) value live across every preceding layer.
                z = z_ref[...]
                # concat-skip expressed as two lane-aligned matmuls instead of
                # jnp.concatenate([h, z], -1) @ W (no XLU relayout of a
                # non-128-aligned operand).
                h = (jnp.dot(h.astype(w_ref.dtype), w_ref[whi, :din_h, :dout],
                             preferred_element_type=jnp.float32)
                     + jnp.dot(z.astype(w_ref.dtype), w_ref[wzi, :din_z, :dout],
                               preferred_element_type=jnp.float32))
            # Bias add in f32 after the bf16 x bf16 -> f32 dot.
            h = h + b_ref[li:li + 1, :dout]
        out_ref[...] = h.astype(out_ref.dtype)

    return kernel


def _fold_affine_chain(w_np, b_np, skip_flags, z_dim, g_width):
    """Fold the activation-free Linear chain into one (z_dim, g_out) affine map."""
    A = np.eye(z_dim, dtype=np.float32)          # h = z @ A + c, starts as identity
    c = np.zeros((z_dim,), np.float32)
    for w, b, sk in zip(w_np, b_np, skip_flags):
        if sk:
            wh, wz = w[:g_width], w[g_width:]
            A, c = A @ wh + wz, c @ wh + b
        else:
            A, c = A @ w, c @ w + b
    return [A], [c], [False]


def base_filter_generator_forward(z, weights, biases, skip_flags, *,
                                  z_dim, g_width, tm=256,
                                  fold_affine=True,
                                  param_dtype=jnp.bfloat16,
                                  out_dtype=jnp.float32):
    """Run the filter-generator MLP on all latent codes z via one pallas_call.

    z:          (z_num, z_dim) f32
    weights:    list of (in_dim, out_dim) arrays (skip layer: in_dim = g_width + z_dim)
    biases:     list of (1, out_dim) arrays
    skip_flags: list of bools, True for the concat-skip layer
    returns:    (z_num, g_out) in out_dtype (set out_dtype=jnp.bfloat16 if the
                consumer accepts it -> halves the output HBM store)
    """
    z = jnp.asarray(z, jnp.float32)
    z_num = int(z.shape[0])

    # ---- host-side (numpy) parameter prep: cheap, and cacheable upstream ----
    w_np = [np.asarray(w, np.float32) for w in weights]
    b_np = [np.asarray(b, np.float32).reshape(-1) for b in biases]
    skip_flags = list(skip_flags)
    g_out = int(w_np[-1].shape[1])

    if fold_affine:
        # The module specifies no nonlinearity, so the chain is exactly one
        # affine map; fold in f32 on the host.
        # TODO(synk): set fold_affine=False if activations are ever added.
        w_np, b_np, skip_flags = _fold_affine_chain(w_np, b_np, skip_flags,
                                                    z_dim, g_width)

    n_layers = len(w_np)
    z_dim_p = _round_up(z_dim, 128)       # lane-dense z / 128-aligned contraction

    mats = []                             # (np array, used_rows, used_cols)
    layer_descs = []
    cur_w = z_dim_p                       # padded activation width entering layer
    for w, sk in zip(w_np, skip_flags):
        din, dout = w.shape
        dout_p = _round_up(dout, 128)     # lane-dense layer outputs (unmasked vst)
        if sk:
            wh, wz = w[:g_width], w[g_width:]
            layer_descs.append(("skip", len(mats), len(mats) + 1,
                                cur_w, z_dim_p, dout_p))
            mats.append((wh, g_width, dout))
            mats.append((wz, din - g_width, dout))
        else:
            layer_descs.append(("plain", len(mats), cur_w, dout_p))
            mats.append((w, din, dout))
        cur_w = dout_p
    g_out_p = cur_w

    din_used = [d[2] for d in layer_descs if d[0] == "plain"] + \
               [x for d in layer_descs if d[0] == "skip" for x in (d[3], d[4])]
    max_in = _round_up(max(din_used), 8)
    max_out = max(d[-1] for d in layer_descs)

    w_slab_np = np.zeros((len(mats), max_in, max_out), np.float32)
    for i, (m, r, c) in enumerate(mats):
        w_slab_np[i, :r, :c] = m
    b_slab_np = np.zeros((n_layers, max_out), np.float32)
    for li, b in enumerate(b_np):
        b_slab_np[li, :b.shape[0]] = b

    # Weights in bf16 (MXU-native, halves slab bytes); biases stay f32.
    w_slab = jnp.asarray(w_slab_np, param_dtype)
    b_slab = jnp.asarray(b_slab_np, jnp.float32)

    # ---- row tiling ----------------------------------------------------------
    tm = min(tm, _round_up(z_num, 8))
    if z_num > 8:
        # Ensure >= 2 row tiles so the "parallel" axis can shard across the two
        # TensorCores of a v7x chip (no effect on single-TC v5e/v6e).
        tm = min(tm, _round_up((z_num + 1) // 2, 8))
    tm = max(8, _round_up(tm, 8))

    z_p = jnp.pad(z, ((0, _round_up(z_num, tm) - z_num), (0, z_dim_p - z_dim)))
    n_tiles = z_p.shape[0] // tm

    kernel = _build_mlp_kernel(tuple(layer_descs))

    out = pl.pallas_call(
        kernel,
        out_shape=jax.ShapeDtypeStruct((z_p.shape[0], g_out_p), out_dtype),
        grid=(n_tiles,),
        in_specs=[
            pl.BlockSpec((tm, z_dim_p), lambda i: (i, 0)),
            # Constant index_map -> the slabs are DMA'd once and reused.
            pl.BlockSpec(w_slab.shape, lambda i: (0, 0, 0)),
            pl.BlockSpec(b_slab.shape, lambda i: (0, 0)),
        ],
        out_specs=pl.BlockSpec((tm, g_out_p), lambda i: (i, 0)),
        compiler_params=pltpu.CompilerParams(
            dimension_semantics=("parallel",)),   # rows shard across v7x's 2 TCs
    )(z_p, w_slab, b_slab)

    return out[:z_num, :g_out]


def init_params(key, *, z_num, z_dim, g_depth, g_width, g_out):
    """Deterministic synthetic parameters matching the module's layer shapes."""
    n_layers = g_depth  # 1 input + (g_depth-2) hidden + 1 output layer
    keys = jax.random.split(key, 2 * n_layers + 1)
    # Embedding: z_num latent codes ~ randn(z_dim)
    z = jax.random.normal(keys[0], (z_num, z_dim), dtype=jnp.float32)

    # Layer structure exactly as in init_filter_generator, with an explicit
    # per-layer skip flag (no shape-based inference).
    in_dims, skip_flags = [z_dim], [False]
    for i in range(g_depth - 2):
        if i == g_depth // 2:
            in_dims.append(g_width + z_dim)
            skip_flags.append(True)
        else:
            in_dims.append(g_width)
            skip_flags.append(False)
    in_dims.append(g_width)
    skip_flags.append(False)
    out_dims = [g_width] * (g_depth - 1) + [g_out]

    weights, biases = [], []
    for li, (din, dout) in enumerate(zip(in_dims, out_dims)):
        bound = 1.0 / float(din) ** 0.5
        w = jax.random.uniform(keys[1 + 2 * li], (din, dout),
                               jnp.float32, -bound, bound)
        b = jax.random.uniform(keys[2 + 2 * li], (1, dout),
                               jnp.float32, -bound, bound)
        weights.append(w)
        biases.append(b)
    return z, weights, biases, skip_flags


def reference_forward(z, weights, biases, skip_flags):
    h = z
    for w, b, sk in zip(weights, biases, skip_flags):
        if sk:
            h = jnp.concatenate([h, z], axis=-1)
        h = h @ w + b
    return h


if __name__ == "__main__":
    # Small config consistent with the module (scaled down): z_num=16 latent
    # codes, z_dim=64, g_depth=5 (so the concat-skip hidden layer is actually
    # exercised), g_width=128, n_lamb_sigma=4, n_lamb_sh=32 -> g_out=128.
    z_num, z_dim, g_depth, g_width = 16, 64, 5, 128
    n_lamb_sigma, n_lamb_sh = 4, 32
    g_out = n_lamb_sigma * n_lamb_sh  # 128

    key = jax.random.PRNGKey(0)
    z, weights, biases, skip_flags = init_params(
        key, z_num=z_num, z_dim=z_dim, g_depth=g_depth,
        g_width=g_width, g_out=g_out)

    # Folded (default, activation-free) path and faithful per-layer path; with
    # z_num=16 the wrapper clamps tm to 8 -> grid=(2,), exercising the row
    # double-buffering and the 2-tile "parallel" split.
    out_fold = base_filter_generator_forward(
        z, weights, biases, skip_flags, z_dim=z_dim, g_width=g_width,
        tm=256, fold_affine=True)
    out_layer = base_filter_generator_forward(
        z, weights, biases, skip_flags, z_dim=z_dim, g_width=g_width,
        tm=256, fold_affine=False)
    out_fold, out_layer = jax.block_until_ready((out_fold, out_layer))

    ref = reference_forward(z, weights, biases, skip_flags)
    assert out_fold.shape == (z_num, g_out)
    assert out_layer.shape == (z_num, g_out)
    # bf16 weights / activations -> loosened tolerance vs the f32 reference.
    assert jnp.allclose(out_fold, ref, atol=5e-2, rtol=5e-2)
    assert jnp.allclose(out_layer, ref, atol=5e-2, rtol=5e-2)

    print("KERNEL_OK")
</pallas_src>

<mosaic_0001>
module attributes {stable_mosaic.version = 11 : i64} {
  func.func @kernel(%arg0: i32, %arg1: memref<8x128xf32, #tpu.memory_space<vmem>>, %arg2: memref<1x128x128xbf16, #tpu.memory_space<vmem>>, %arg3: memref<1x128xf32, #tpu.memory_space<vmem>>, %arg4: memref<8x128xf32, #tpu.memory_space<vmem>>) attributes {dimension_semantics = [#tpu.dimension_semantics<parallel>], iteration_bounds = array<i64: 2>, scalar_prefetch = 0 : i64, scratch_operands = 0 : i64, tpu.core_type = #tpu.core_type<tc>, window_params = [{transform_indices = @transform_0, window_bounds = array<i64: 8, 128>}, {pipeline_mode = #tpu.pipeline_mode<synchronous>, transform_indices = @transform_1, window_bounds = array<i64: 1, 128, 128>}, {pipeline_mode = #tpu.pipeline_mode<synchronous>, transform_indices = @transform_2, window_bounds = array<i64: 1, 128>}, {transform_indices = @transform_3, window_bounds = array<i64: 8, 128>}]} {
    %c0 = arith.constant 0 : index
    %c0_0 = arith.constant 0 : index
    %0 = vector.load %arg1[%c0, %c0_0] : memref<8x128xf32, #tpu.memory_space<vmem>>, vector<8x128xf32>
    %1 = arith.truncf %0 : vector<8x128xf32> to vector<8x128xbf16>
    %c0_1 = arith.constant 0 : index
    %c0_2 = arith.constant 0 : index
    %c0_3 = arith.constant 0 : index
    %2 = vector.load %arg2[%c0_1, %c0_2, %c0_3] : memref<1x128x128xbf16, #tpu.memory_space<vmem>>, vector<1x128x128xbf16>
    %3 = vector.shape_cast %2 : vector<1x128x128xbf16> to vector<128x128xbf16>
    %cst = arith.constant dense<0.000000e+00> : vector<8x128xf32>
    %4 = tpu.matmul %1, %3, %cst {dimension_numbers = #tpu.dot_dimension_numbers<[1], [0], [0], [1], [0, 0, 1, 1], [], []>} : vector<8x128xbf16>, vector<128x128xbf16>, vector<8x128xf32> -> vector<8x128xf32>
    %c0_4 = arith.constant 0 : index
    %c0_5 = arith.constant 0 : index
    %5 = vector.load %arg3[%c0_4, %c0_5] : memref<1x128xf32, #tpu.memory_space<vmem>>, vector<1x128xf32>
    %6 = vector.broadcast %5 : vector<1x128xf32> to vector<8x128xf32>
    %7 = arith.addf %4, %6 : vector<8x128xf32>
    %c0_6 = arith.constant 0 : index
    %c0_7 = arith.constant 0 : index
    %8 = vector.load %arg4[%c0_6, %c0_7] : memref<8x128xf32, #tpu.memory_space<vmem>>, vector<8x128xf32>
    tpu.vector_store %arg4[%c0_6, %c0_7], %7 {strides = array<i32>} : memref<8x128xf32, #tpu.memory_space<vmem>>, vector<8x128xf32>,
    return
  }
  func.func @transform_0(%arg0: i32) -> (i32, i32) {
    %c0_i32 = arith.constant 0 : i32
    %c0_i32_0 = arith.constant 0 : i32
    return %arg0, %c0_i32 : i32, i32
  }
  func.func @transform_1(%arg0: i32) -> (i32, i32, i32) {
    %c0_i32 = arith.constant 0 : i32
    %c0_i32_0 = arith.constant 0 : i32
    %c0_i32_1 = arith.constant 0 : i32
    %c0_i32_2 = arith.constant 0 : i32
    return %c0_i32, %c0_i32_0, %c0_i32_1 : i32, i32, i32
  }
  func.func @transform_2(%arg0: i32) -> (i32, i32) {
    %c0_i32 = arith.constant 0 : i32
    %c0_i32_0 = arith.constant 0 : i32
    %c0_i32_1 = arith.constant 0 : i32
    return %c0_i32, %c0_i32_0 : i32, i32
  }
  func.func @transform_3(%arg0: i32) -> (i32, i32) {
    %c0_i32 = arith.constant 0 : i32
    %c0_i32_0 = arith.constant 0 : i32
    return %arg0, %c0_i32 : i32, i32
  }
}

</mosaic_0001>

<llo_original>
// kernel: tpu_custom_call.1
$region0: #{tpu_custom_call.1}
  #allocation0 [shape = 'u32[]', space=smem, size = 0x4, offset = 0x4, fixed_abs, tag = 'smem constant byte address 0x4 - core index']
  #allocation1 [shape = 'u32[144,128]{1,0:T(1,128)}', space=vmem, size = 0x12000, scoped, tag = 'internal scratch']
  %s0 = inlined_call_operand.hbm [shape: f32[16,128], index: 0, kind: input, shape index: {}]
  %s1 = inlined_call_operand.hbm [shape: bf16[1,128,128], index: 1, kind: input, shape index: {}]
  %s2 = inlined_call_operand.vmem [shape: f32[1,128], index: 2, kind: input, shape index: {}]
  %s3 = inlined_call_operand.hbm [shape: f32[16,128], index: 3, kind: output, shape index: {}]
  %s4 = sld [smem:[#allocation0]]
  $region53: #{tpu_custom_call.1} parent=0
    _
  %s6 = ssub.s32 1, %s4
  %s7 = scalar_select 0, %s6, %s4
  $region1: #{tpu_custom_call.1} parent=0
    #allocation2 [shape = 'u8[8192]{0}', space=vmem, size = 0x2000, scoped, tag = 'input window, operand 0']
    #allocation3 [shape = 's32[2]{0}', space=sflag, size = 0x8, scoped, tag = 'scoped memory for tpu_custom_call.1']
    #allocation4 [shape = 's32[2]{0}', space=sflag, size = 0x8, scoped, tag = 'scoped memory for tpu_custom_call.1']
    #allocation5 [shape = 'u8[32768]{0}', space=vmem, size = 0x8000, scoped, tag = 'input window, operand 1, single buffered']
    #allocation6 [shape = 's32[1]{0}', space=sflag, size = 0x4, scoped, tag = 'scoped memory for tpu_custom_call.1']
    #allocation7 [shape = 'u8[8192]{0}', space=vmem, size = 0x2000, scoped, tag = 'output window, operand 0']
    %8 = vsyncpa [#allocation3], 0
    %s9 = scalar_lea.sflag [#allocation3], 1
    %10 = vsyncpa %s9, 0
    %11 = vsyncpa [#allocation6], 0
    %12 = vsyncpa [#allocation4], 0
    %s13 = scalar_lea.sflag [#allocation4], 1
    %14 = vsyncpa %s13, 0
    loop: start=0, step=1, limit=4
    $region2: #{tpu_custom_call.1} parent=1 // loop_pre_header
      _
    $region3: #{tpu_custom_call.1} parent=1 // loop_header
      %s16 = sphi 0, %s20
      %p17 = scmp.ge.s32.totalorder %s16, 4
      %s26 = sphi 0, %s28
      %s29 = sphi 0, %s26
      %s30 = sphi 0, %s29
      %s46 = sphi 0, %s30
      %s50 = sphi 0, %s50
      %s52 = sphi 0, %s50
      %s53 = sphi 0, %s52
      %s67 = sphi 0, %s53
      %s71 = sphi 0, %s71
      %s73 = sphi 0, %s71
      %s74 = sphi 0, %s73
      %s88 = sphi 0, %s74
      %s94 = sphi 0, %s96
      %s97 = sphi 0, %s94
      %s98 = sphi 0, %s97
      %s114 = sphi 0, %s98
    $region4: #{tpu_custom_call.1} parent=1 // loop_header_branch
      %19 = sbr.rel (%p17) target = $region8
    $region5: #{tpu_custom_call.1} parent=1 // loop_body
      %s21 = ssub.s32 %s16, 1
      %s22 = ssub.s32 %s16, 2
      %s23 = sadd.s32 %s16, 1
      %s24 = ssub.s32 %s16, %s23
      %p25 = scmp.eq.s32.totalorder %s24, 0
      %s27 = sadd.s32 %s26, 1
      %s28 = scalar_select %p25, %s26, %s27
      %p31 = pneg %p25
      %p32 = scmp.eq.s32.totalorder %s16, 1
      %p33 = por %p31, %p32
      %p34 = scmp.ne.s32.totalorder %s26, %s29
      %p35 = scmp.eq.s32.totalorder %s16, 0
      %p36 = por %p34, %p35
      %p37 = scmp.ne.s32.totalorder %s26, %s29
      %p38 = scmp.eq.s32.totalorder %s21, 1
      %p39 = por %p37, %p38
      %p40 = scmp.ne.s32.totalorder %s29, %s30
      %p41 = scmp.eq.s32.totalorder %s21, 0
      %p42 = por %p40, %p41
      %p43 = scmp.ne.s32.totalorder %s29, %s30
      %p44 = scmp.eq.s32.totalorder %s22, 1
      %p45 = por %p43, %p44
      %p47 = scmp.ne.s32.totalorder %s30, %s46
      %p48 = scmp.eq.s32.totalorder %s22, 0
      %p49 = por %p47, %p48
      %s51 = sadd.s32 %s50, 1
      %p54 = scmp.eq.s32.totalorder %s16, 1
      %p55 = scmp.ne.s32.totalorder %s50, %s52
      %p56 = scmp.eq.s32.totalorder %s16, 0
      %p57 = por %p55, %p56
      %p58 = scmp.ne.s32.totalorder %s50, %s52
      %p59 = scmp.eq.s32.totalorder %s21, 1
      %p60 = por %p58, %p59
      %p61 = scmp.ne.s32.totalorder %s52, %s53
      %p62 = scmp.eq.s32.totalorder %s21, 0
      %p63 = por %p61, %p62
      %p64 = scmp.ne.s32.totalorder %s52, %s53
      %p65 = scmp.eq.s32.totalorder %s22, 1
      %p66 = por %p64, %p65
      %p68 = scmp.ne.s32.totalorder %s53, %s67
      %p69 = scmp.eq.s32.totalorder %s22, 0
      %p70 = por %p68, %p69
      %s72 = sadd.s32 %s71, 1
      %p75 = scmp.eq.s32.totalorder %s16, 1
      %p76 = scmp.ne.s32.totalorder %s71, %s73
      %p77 = scmp.eq.s32.totalorder %s16, 0
      %p78 = por %p76, %p77
      %p79 = scmp.ne.s32.totalorder %s71, %s73
      %p80 = scmp.eq.s32.totalorder %s21, 1
      %p81 = por %p79, %p80
      %p82 = scmp.ne.s32.totalorder %s73, %s74
      %p83 = scmp.eq.s32.totalorder %s21, 0
      %p84 = por %p82, %p83
      %p85 = scmp.ne.s32.totalorder %s73, %s74
      %p86 = scmp.eq.s32.totalorder %s22, 1
      %p87 = por %p85, %p86
      %p89 = scmp.ne.s32.totalorder %s74, %s88
      %p90 = scmp.eq.s32.totalorder %s22, 0
      %p91 = por %p89, %p90
      %s92 = ssub.s32 %s16, %s23
      %p93 = scmp.eq.s32.totalorder %s92, 0
      %s95 = sadd.s32 %s94, 1
      %s96 = scalar_select %p93, %s94, %s95
      %p99 = pneg %p93
      %p100 = scmp.eq.s32.totalorder %s16, 1
      %p101 = por %p99, %p100
      %p102 = scmp.ne.s32.totalorder %s94, %s97
      %p103 = scmp.eq.s32.totalorder %s16, 0
      %p104 = por %p102, %p103
      %p105 = scmp.ne.s32.totalorder %s94, %s97
      %p106 = scmp.eq.s32.totalorder %s21, 1
      %p107 = por %p105, %p106
      %p108 = scmp.ne.s32.totalorder %s97, %s98
      %p109 = scmp.eq.s32.totalorder %s21, 0
      %p110 = por %p108, %p109
      %p111 = scmp.ne.s32.totalorder %s97, %s98
      %p112 = scmp.eq.s32.totalorder %s22, 1
      %p113 = por %p111, %p112
      %p115 = scmp.ne.s32.totalorder %s98, %s114
      %p116 = scmp.eq.s32.totalorder %s22, 0
      %p117 = por %p115, %p116
      %p118 = scmp.le.s32.totalorder 1, %s16
      %p119 = scmp.lt.s32.totalorder %s16, 3
      %p120 = pnand %p118, %p119
      %p121 = pneg %p120
      // Predicated region
      $region9: #{tpu_custom_call.1} parent=5 // pred_check
        _
      $region10: #{tpu_custom_call.1} parent=5 // pred_check_branch
        %123 = sbr.rel (%p120) target = $region12
      $region11: #{tpu_custom_call.1} parent=5 // pred_region
        %s124 = ssub.s32 %s16, 1
        // Predicated region
        $region13: #{tpu_custom_call.1} parent=11 // pred_check
          %p125 = pneg %p63
        $region14: #{tpu_custom_call.1} parent=11 // pred_check_branch
          %127 = sbr.rel (%p125) target = $region16
        $region15: #{tpu_custom_call.1} parent=11 // pred_region
          %s129 = ssub.s32 1024, 1024
          %130 = vsyncadd [#allocation6], %s129
          %s131 = sshll.u32 [#allocation5], 4
          %s132 = int_to_ptr.vmem [resolvable:$true] %s131
          %137 = dma.hbm_to_vmem [thread:$0]  %s1, 1024, %s132, [#allocation6], 64, 64, 4
        $region16: #{tpu_custom_call.1} parent=11 // pred_fallthru
          _
        // Predicated region
        $region17: #{tpu_custom_call.1} parent=11 // pred_check
          %p138 = pneg %p84
        $region18: #{tpu_custom_call.1} parent=11 // pred_check_branch
          %140 = sbr.rel (%p138) target = $region20
        $region19: #{tpu_custom_call.1} parent=11 // pred_region
          _
        $region20: #{tpu_custom_call.1} parent=11 // pred_fallthru
          _
      $region12: #{tpu_custom_call.1} parent=5 // pred_fallthru
        _
      %p141 = scmp.lt.s32.totalorder %s16, 2
      // Predicated region
      $region21: #{tpu_custom_call.1} parent=5 // pred_check
        %p142 = pneg %p141
      $region22: #{tpu_custom_call.1} parent=5 // pred_check_branch
        %144 = sbr.rel (%p142) target = $region24
      $region23: #{tpu_custom_call.1} parent=5 // pred_region
        // Predicated region
        $region25: #{tpu_custom_call.1} parent=23 // pred_check
          %p145 = pneg %p36
        $region26: #{tpu_custom_call.1} parent=23 // pred_check_branch
          %147 = sbr.rel (%p145) target = $region28
        $region27: #{tpu_custom_call.1} parent=23 // pred_region
          %s148 = sand.u32 %s26, 1
          %s149 = scalar_lea.sflag [#allocation3], %s148
          %s150 = sand.u32 %s26, 1
          %s151 = smul.addr %s150, 8
          %s152 = scalar_lea.vmem [#allocation2], %s151
          %s154 = ssub.s32 128, 128
          %155 = vsyncadd %s149, %s154
          %s156 = smul.addr %s16, 128
          %s157 = scalar_lea.hbm %s0, %s156
          %s159 = sshll.u32 %s152, 4
          %s160 = int_to_ptr.vmem [resolvable:$true] %s159
          %162 = dma.hbm_to_vmem [thread:$0]  %s157, 128, %s160, %s149
        $region28: #{tpu_custom_call.1} parent=23 // pred_fallthru
          _
      $region24: #{tpu_custom_call.1} parent=5 // pred_fallthru
        _
      %p163 = scmp.le.s32.totalorder 1, %s16
      %p164 = scmp.lt.s32.totalorder %s16, 3
      %p165 = pnand %p163, %p164
      %p166 = pneg %p165
      // Predicated region
      $region29: #{tpu_custom_call.1} parent=5 // pred_check
        _
      $region30: #{tpu_custom_call.1} parent=5 // pred_check_branch
        %168 = sbr.rel (%p165) target = $region32
      $region31: #{tpu_custom_call.1} parent=5 // pred_region
        %s169 = ssub.s32 %s16, 1
        %s170 = sand.u32 %s29, 1
        %s171 = scalar_lea.sflag [#allocation3], %s170
        %s172 = sand.u32 %s29, 1
        %s173 = smul.addr %s172, 8
        %s174 = scalar_lea.vmem [#allocation2], %s173
        // Predicated region
        $region33: #{tpu_custom_call.1} parent=31 // pred_check
          %p175 = pneg %p42
        $region34: #{tpu_custom_call.1} parent=31 // pred_check_branch
          %177 = sbr.rel (%p175) target = $region36
        $region35: #{tpu_custom_call.1} parent=31 // pred_region
          %178 = dma.done %s171, 128
        $region36: #{tpu_custom_call.1} parent=31 // pred_fallthru
          _
        // Predicated region
        $region37: #{tpu_custom_call.1} parent=31 // pred_check
          %p179 = pneg %p63
        $region38: #{tpu_custom_call.1} parent=31 // pred_check_branch
          %181 = sbr.rel (%p179) target = $region40
        $region39: #{tpu_custom_call.1} parent=31 // pred_region
          %182 = dma.done [#allocation6], 1024
        $region40: #{tpu_custom_call.1} parent=31 // pred_fallthru
          _
        %s183 = sand.u32 %s29, 1
        %s184 = scalar_lea.sflag [#allocation3], %s183
        %s185 = sand.u32 %s29, 1
        %s186 = smul.addr %s185, 8
        %s187 = scalar_lea.vmem [#allocation2], %s186
        %p188 = pneg %p42
        %p189 = pneg %p39
        %p190 = pneg %p63
        %p191 = pneg %p60
        %p192 = pneg %p84
        %p193 = pneg %p81
        %p194 = pneg %p110
        %p195 = pneg %p107
        %s196 = sand.u32 %s97, 1
        %s197 = scalar_lea.sflag [#allocation4], %s196
        %s198 = sand.u32 %s97, 1
        %s199 = smul.addr %s198, 8
        %s200 = scalar_lea.vmem [#allocation7], %s199
        %v202 = vld [vmem:[%s174] sm:$0xff]
        %v203 = vpack.c.bf16 %v202, %v202
        %v204 = vld [vmem:[#allocation5] sm:$0xf]
        %v205 = vld [vmem:[#allocation5 + $0x4] sm:$0xf]
        %v206 = vld [vmem:[#allocation5 + $0x8] sm:$0xf]
        %v207 = vld [vmem:[#allocation5 + $0xc] sm:$0xf]
        %v208 = vld [vmem:[#allocation5 + $0x10] sm:$0xf]
        %v209 = vld [vmem:[#allocation5 + $0x14] sm:$0xf]
        %v210 = vld [vmem:[#allocation5 + $0x18] sm:$0xf]
        %v211 = vld [vmem:[#allocation5 + $0x1c] sm:$0xf]
        %v212 = vld [vmem:[#allocation5 + $0x20] sm:$0xf]
        %v213 = vld [vmem:[#allocation5 + $0x24] sm:$0xf]
        %v214 = vld [vmem:[#allocation5 + $0x28] sm:$0xf]
        %v215 = vld [vmem:[#allocation5 + $0x2c] sm:$0xf]
        %v216 = vld [vmem:[#allocation5 + $0x30] sm:$0xf]
        %v217 = vld [vmem:[#allocation5 + $0x34] sm:$0xf]
        %v218 = vld [vmem:[#allocation5 + $0x38] sm:$0xf]
        %v219 = vld [vmem:[#allocation5 + $0x3c] sm:$0xf]
        %v220 = vld [vmem:[%s2] sm:$0x1]
        %v222 = vlaneseq
        %v223 = vshrl.u32 %v222, 7
        %v224 = vsub.s32 0, %v223
        %v225 = vrot.slane %v220, %v224
        %v243 = vunpack.c.l.b16 %v204
        %v244 = vunpack.c.l.b16 %v205
        %v245 = vunpack.c.l.b16 %v206
        %v246 = vunpack.c.l.b16 %v207
        %v247 = vunpack.c.l.b16 %v208
        %v248 = vunpack.c.l.b16 %v209
        %v249 = vunpack.c.l.b16 %v210
        %v250 = vunpack.c.l.b16 %v211
        %v251 = vunpack.c.l.b16 %v212
        %v252 = vunpack.c.l.b16 %v213
        %v253 = vunpack.c.l.b16 %v214
        %v254 = vunpack.c.l.b16 %v215
        %v255 = vunpack.c.l.b16 %v216
        %v256 = vunpack.c.l.b16 %v217
        %v257 = vunpack.c.l.b16 %v218
        %v258 = vunpack.c.l.b16 %v219
        %v259 = vpack.c.b16 %v244, %v243
        %v260 = vpack.c.b16 %v246, %v245
        %v261 = vpack.c.b16 %v248, %v247
        %v262 = vpack.c.b16 %v250, %v249
        %v263 = vpack.c.b16 %v252, %v251
        %v264 = vpack.c.b16 %v254, %v253
        %v265 = vpack.c.b16 %v256, %v255
        %v266 = vpack.c.b16 %v258, %v257
        %275 = vmatprep.subr.bf16.mxu0 0
        %276 = vmatpush1.bf16.msra.mxu0 %v259
        %277 = vmatprep.subr.bf16.mxu0 0
        %278 = vmatpush1.bf16.msra.mxu0 %v260
        %279 = vmatprep.subr.bf16.mxu0 0
        %280 = vmatpush1.bf16.msra.mxu0 %v261
        %281 = vmatprep.subr.bf16.mxu0 0
        %282 = vmatpush1.bf16.msra.mxu0 %v262
        %283 = vmatprep.subr.bf16.mxu0 0
        %284 = vmatpush1.bf16.msra.mxu0 %v263
        %285 = vmatprep.subr.bf16.mxu0 0
        %286 = vmatpush1.bf16.msra.mxu0 %v264
        %287 = vmatprep.subr.bf16.mxu0 0
        %288 = vmatpush1.bf16.msra.mxu0 %v265
        %289 = vmatprep.subr.bf16.mxu0 0
        %290 = vmatpush1.bf16.msra.mxu0 %v266
        %291 = vmatprep.subr.bf16.mxu0 0
        %292 = vmatpush1.bf16.msra.mxu0 0
        %293 = vmatprep.subr.bf16.mxu0 0
        %294 = vmatpush1.bf16.msra.mxu0 0
        %295 = vmatprep.subr.bf16.mxu0 0
        %296 = vmatpush1.bf16.msra.mxu0 0
        %297 = vmatprep.subr.bf16.mxu0 0
        %298 = vmatpush1.bf16.msra.mxu0 0
        %299 = vmatprep.subr.bf16.mxu0 0
        %300 = vmatpush1.bf16.msra.mxu0 0
        %301 = vmatprep.subr.bf16.mxu0 0
        %302 = vmatpush1.bf16.msra.mxu0 0
        %303 = vmatprep.subr.bf16.mxu0 0
        %304 = vmatpush1.bf16.msra.mxu0 0
        %305 = vmatprep.subr.bf16.mxu0 0
        %306 = vmatpush1.bf16.msra.mxu0 0
        %307 = vmatprep.mubr.bf16.mxu0 0
        %308 = vmatmul.mubr.bf16.gmra.mrb[0].mxu0 %v203
        %v309 = vpop.f32.mrb[0].mxu0
        %v310 = vadd.f32 %v225, %v309
        %v311 = vpop.f32.mrb[0].mxu0
        %v312 = vpop.f32.mrb[0].mxu0
        %v313 = vpop.f32.mrb[0].mxu0
        %314 = vdwg.mxu0
        %315 = vst [vmem:[%s200] sm:$0xff] %v310
        %s316 = sand.u32 %s97, 1
        %s317 = scalar_lea.sflag [#allocation4], %s316
        %s318 = sand.u32 %s97, 1
        %s319 = smul.addr %s318, 8
        %s320 = scalar_lea.vmem [#allocation7], %s319
        // Predicated region
        $region41: #{tpu_custom_call.1} parent=31 // pred_check
          %p321 = pneg %p107
        $region42: #{tpu_custom_call.1} parent=31 // pred_check_branch
          %323 = sbr.rel (%p321) target = $region44
        $region43: #{tpu_custom_call.1} parent=31 // pred_region
          %s325 = ssub.s32 128, 128
          %326 = vsyncadd %s317, %s325
          %s327 = smul.addr %s21, 128
          %s328 = scalar_lea.hbm %s3, %s327
          %s330 = sshll.u32 %s320, 4
          %s331 = int_to_ptr.vmem [resolvable:$true] %s330
          %333 = dma.vmem_to_hbm [thread:$0]  %s331, 128, %s328, %s317
        $region44: #{tpu_custom_call.1} parent=31 // pred_fallthru
          _
      $region32: #{tpu_custom_call.1} parent=5 // pred_fallthru
        _
      %p334 = scmp.le.s32.totalorder 2, %s16
      // Predicated region
      $region45: #{tpu_custom_call.1} parent=5 // pred_check
        %p335 = pneg %p334
      $region46: #{tpu_custom_call.1} parent=5 // pred_check_branch
        %337 = sbr.rel (%p335) target = $region48
      $region47: #{tpu_custom_call.1} parent=5 // pred_region
        %s338 = ssub.s32 %s16, 2
        // Predicated region
        $region49: #{tpu_custom_call.1} parent=47 // pred_check
          %p339 = pneg %p113
        $region50: #{tpu_custom_call.1} parent=47 // pred_check_branch
          %341 = sbr.rel (%p339) target = $region52
        $region51: #{tpu_custom_call.1} parent=47 // pred_region
          %s342 = sand.u32 %s98, 1
          %s343 = scalar_lea.sflag [#allocation4], %s342
          %s344 = sand.u32 %s98, 1
          %s345 = smul.addr %s344, 8
          %s346 = scalar_lea.vmem [#allocation7], %s345
          %347 = dma.done %s343, 128
        $region52: #{tpu_custom_call.1} parent=47 // pred_fallthru
          _
      $region48: #{tpu_custom_call.1} parent=5 // pred_fallthru
        _
    $region6: #{tpu_custom_call.1} parent=1 // loop_footer
      %s20 = sadd.s32 1, %s16
    $region7: #{tpu_custom_call.1} parent=1 // loop_footer_branch
      %15 = sbr.rel target = $region3
    $region8: #{tpu_custom_call.1} parent=1 // loop_exit
      _
    %348 = vsyncpa [#allocation3], 1
    %s349 = scalar_lea.sflag [#allocation3], 1
    %350 = vsyncpa %s349, 1
    %351 = vsyncpa [#allocation6], 1
    %352 = vsyncpa [#allocation4], 1
    %s353 = scalar_lea.sflag [#allocation4], 1
    %354 = vsyncpa %s353, 1

</llo_original>
